<compile_context>
chip_gen: v7x
topology: tpu7x:2x2x1
jax: 0.10.0
libtpu: 0.0.40
codegen_flags: <defaults>
</compile_context>

<pallas_src>
import jax
import jax.numpy as jnp
from jax import lax
from jax.experimental import pallas as pl
from jax.experimental.pallas import tpu as pltpu

EPS = 1e-5
LANES = 128


def _round_up(x, m):
    return (x + m - 1) // m * m


def _vmem_capacity_bytes():
    # v5e/v6e: 128 MiB physical VMEM, v7x: 64 MiB.  Default conservatively.
    try:
        return int(pltpu.get_tpu_info().vmem_capacity_bytes)
    except Exception:
        return 64 * 1024 * 1024


def _pick_tile_m(M, vmem_bytes):
    """Row tile for the pixel axis of kernel 1 (HBM-bound streaming matmul)."""
    if M < 512:
        assert M % 8 == 0, f"pixel count {M} must be a multiple of 8"
        return M
    # v5e/v6e (128 MiB VMEM) can afford deeper tiles than v7x (64 MiB).
    max_tm = 2048 if vmem_bytes >= 128 * 1024 * 1024 else 1024
    if M >= 4096:
        return max_tm
    return 512


# ---------------------------------------------------------------------------
# Kernel 1: fused BN(scale,bias) + ReLU + 1x1 conv, gridded over pixel rows,
#           with fused per-block sum / sum-of-squares of the output (for BN2).
#   x2d:        [M, C]      (M = N*H*W pixels, f32)
#   scale/bias: [1, C]      (f32)
#   w1p:        [C, Cip]    (1x1 conv weight, transposed, lane-padded, f32/bf16)
# Outputs:
#   y:    [M, Cip]          (matmul dtype; HBM intermediate)
#   s1:   [grid_m*8, Cip]   per-block partial sums (f32)
#   s2:   [grid_m*8, Cip]   per-block partial sums of squares (f32)
# ---------------------------------------------------------------------------
def bn_relu_conv1x1_fused_stats(x2d, scale, bias, w1p, *, tm, vmem_limit):
    M, C = x2d.shape
    Cip = w1p.shape[-1]
    grid_m = pl.cdiv(M, tm)
    partial = (M % tm) != 0
    md = w1p.dtype

    def kernel(x_ref, s_ref, b_ref, w_ref, y_ref, sum_ref, sq_ref):
        a = jnp.maximum(x_ref[...] * s_ref[...] + b_ref[...], 0.0)
        if md != jnp.float32:
            a = a.astype(md)
        y = jnp.dot(a, w_ref[...], preferred_element_type=jnp.float32)
        y_ref[...] = y.astype(y_ref.dtype)
        # Fused per-block partial sums for the BN2 batch statistics.
        if partial:
            # Only compiled in when the last block hangs past M: the garbage
            # rows of the padded block must not pollute the statistics.
            row = (pl.program_id(0) * tm
                   + lax.broadcasted_iota(jnp.int32, (tm, 1), 0))
            y = jnp.where(row < M, y, 0.0)
        yr = y.reshape(tm // 8, 8, Cip)          # keep sublane grouping intact
        sum_ref[...] = jnp.sum(yr, axis=0)
        sq_ref[...] = jnp.sum(yr * yr, axis=0)

    return pl.pallas_call(
        kernel,
        out_shape=(
            jax.ShapeDtypeStruct((M, Cip), md),
            jax.ShapeDtypeStruct((grid_m * 8, Cip), jnp.float32),
            jax.ShapeDtypeStruct((grid_m * 8, Cip), jnp.float32),
        ),
        grid=(grid_m,),
        in_specs=[
            pl.BlockSpec((tm, C), lambda i: (i, 0)),
            pl.BlockSpec((1, C), lambda i: (0, 0)),
            pl.BlockSpec((1, C), lambda i: (0, 0)),
            pl.BlockSpec((C, Cip), lambda i: (0, 0)),
        ],
        out_specs=(
            pl.BlockSpec((tm, Cip), lambda i: (i, 0)),
            pl.BlockSpec((8, Cip), lambda i: (i, 0)),
            pl.BlockSpec((8, Cip), lambda i: (i, 0)),
        ),
        compiler_params=pltpu.CompilerParams(
            dimension_semantics=("parallel",),
            vmem_limit_bytes=vmem_limit,
        ),
        cost_estimate=pl.CostEstimate(
            flops=2 * M * C * Cip + 5 * M * Cip,
            transcendentals=0,
            bytes_accessed=(x2d.dtype.itemsize * M * C
                            + jnp.dtype(md).itemsize * (M * Cip + C * Cip)
                            + 4 * 2 * grid_m * 8 * Cip),
        ),
    )(x2d, scale, bias, w1p)


# ---------------------------------------------------------------------------
# Kernel 2: fused BN(scale,bias) + ReLU + 3x3 conv (pad=1, stride=1),
#           gridded over batch images.  The activation is staged into a
#           zero-haloed VMEM scratch; each of the 9 taps is a static sublane
#           slice + matmul, masked (post-matmul) only at the left/right image
#           columns, accumulated locally and stored once.
#   y3:         [N, H*W, Cip]   (matmul dtype)
#   scale/bias: [1, Cip]        (f32)
#   w2p:        [9, Cip, Gp]    (HWIO flattened over the 3x3 taps, lane-padded)
# Output:
#   o:          [N, H*W, Gp]    (f32)
# ---------------------------------------------------------------------------
def bn_relu_conv3x3(y3, scale, bias, w2p, H, W, *, vmem_limit):
    N, HW, Cip = y3.shape
    Gp = w2p.shape[-1]
    assert HW == H * W
    md = w2p.dtype
    PAD = W + 8                      # halo rows per side (covers |dy*W + dx|)

    def kernel(y_ref, s_ref, b_ref, w_ref, o_ref, halo_ref):
        # BN2 + ReLU in f32.
        a = jnp.maximum(
            y_ref[0].astype(jnp.float32) * s_ref[...] + b_ref[...], 0.0)
        # Stage into the zero-haloed scratch (halos re-zeroed every step so the
        # grid axis can be sharded across cores safely).
        halo_ref[0:PAD, :] = jnp.zeros((PAD, Cip), jnp.float32)
        halo_ref[PAD + HW:PAD + HW + PAD, :] = jnp.zeros((PAD, Cip), jnp.float32)
        halo_ref[PAD:PAD + HW, :] = a
        # Left/right column-boundary masks, hoisted out of the tap loop.
        col = lax.broadcasted_iota(jnp.int32, (HW, 1), 0) % W
        left_ok = col >= 1           # tap dx == -1 reads column j-1
        right_ok = col <= W - 2      # tap dx == +1 reads column j+1

        acc = None
        t = 0
        for dy in (-1, 0, 1):
            for dx in (-1, 0, 1):
                start = PAD + dy * W + dx
                slab = halo_ref[start:start + HW, :]     # shifted activation
                if md != jnp.float32:
                    slab = slab.astype(md)
                contrib = jnp.dot(slab, w_ref[t],
                                  preferred_element_type=jnp.float32)
                # Mask AFTER the matmul: [HW, Gp] instead of [HW, Cip].
                if dx == -1:
                    contrib = jnp.where(left_ok, contrib, 0.0)
                elif dx == 1:
                    contrib = jnp.where(right_ok, contrib, 0.0)
                acc = contrib if acc is None else acc + contrib
                t += 1
        o_ref[0] = acc               # single store of the output block

    return pl.pallas_call(
        kernel,
        out_shape=jax.ShapeDtypeStruct((N, HW, Gp), jnp.float32),
        grid=(N,),
        in_specs=[
            pl.BlockSpec((1, HW, Cip), lambda n: (n, 0, 0)),
            pl.BlockSpec((1, Cip), lambda n: (0, 0)),
            pl.BlockSpec((1, Cip), lambda n: (0, 0)),
            pl.BlockSpec((9, Cip, Gp), lambda n: (0, 0, 0)),
        ],
        out_specs=pl.BlockSpec((1, HW, Gp), lambda n: (n, 0, 0)),
        scratch_shapes=[pltpu.VMEM((HW + 2 * PAD, Cip), jnp.float32)],
        compiler_params=pltpu.CompilerParams(
            dimension_semantics=("parallel",),
            vmem_limit_bytes=vmem_limit,
        ),
        cost_estimate=pl.CostEstimate(
            flops=2 * N * HW * 9 * Cip * Gp,
            transcendentals=0,
            bytes_accessed=(jnp.dtype(md).itemsize * (N * HW * Cip + 9 * Cip * Gp)
                            + 4 * N * HW * Gp),
        ),
    )(y3, scale, bias, w2p)


# ---------------------------------------------------------------------------
# Full Bottleneck forward (NCHW in / NCHW out, matching the PyTorch module).
# ---------------------------------------------------------------------------
def bottleneck_forward(x_nchw, params, matmul_dtype=jnp.float32):
    N, C, H, W = x_nchw.shape
    Cip = params["w1p"].shape[-1]            # padded interChannels (lane dense)
    Gp = params["w2p"].shape[-1]             # padded growthRate    (lane dense)
    G = params["w2_oihw"].shape[0]           # true growthRate
    M = N * H * W

    vmem_cap = _vmem_capacity_bytes()
    vmem_limit = (64 * 1024 * 1024 if vmem_cap >= 128 * 1024 * 1024
                  else 32 * 1024 * 1024)
    tm = _pick_tile_m(M, vmem_cap)

    x_nhwc = jnp.transpose(x_nchw, (0, 2, 3, 1)).astype(jnp.float32)
    x2d = x_nhwc.reshape(M, C)

    # --- BN1 batch statistics (training mode, biased var) folded to scale/bias
    mean1 = jnp.mean(x2d, axis=0)
    var1 = jnp.var(x2d, axis=0)
    scale1 = params["gamma1"] / jnp.sqrt(var1 + EPS)
    bias1 = params["beta1"] - mean1 * scale1

    w1p = params["w1p"].astype(matmul_dtype)
    w2p = params["w2p"].astype(matmul_dtype)

    # --- Kernel 1: BN1 + ReLU + conv1 (1x1), fused BN2 statistics ---
    y2d, s1, s2 = bn_relu_conv1x1_fused_stats(
        x2d, scale1.reshape(1, C), bias1.reshape(1, C), w1p,
        tm=tm, vmem_limit=vmem_limit)

    # Finish BN2 batch statistics from the fused per-block partial sums.
    # (E[y^2] - E[y]^2 in f32; post-ReLU cancellation is mild, clamp anyway.)
    ysum = jnp.sum(s1, axis=0)               # [Cip]
    ysq = jnp.sum(s2, axis=0)                # [Cip]
    mean2 = ysum / M
    var2 = jnp.maximum(ysq / M - mean2 * mean2, 0.0)
    scale2 = params["gamma2p"] / jnp.sqrt(var2 + EPS)
    bias2 = params["beta2p"] - mean2 * scale2

    # --- Kernel 2: BN2 + ReLU + conv2 (3x3, pad=1) ---
    y3 = y2d.reshape(N, H * W, Cip)
    o3 = bn_relu_conv3x3(y3, scale2.reshape(1, Cip), bias2.reshape(1, Cip),
                         w2p, H, W, vmem_limit=vmem_limit)

    o_nhwc = o3.reshape(N, H, W, Gp)[..., :G]           # crop lane padding
    o_nchw = jnp.transpose(o_nhwc, (0, 3, 1, 2))

    # --- channel concat (XLA glue) ---
    # TODO(synk): fuse via input_output_aliases into an NHWC concat buffer.
    return jnp.concatenate([x_nchw.astype(jnp.float32), o_nchw], axis=1)


# ---------------------------------------------------------------------------
# Pure-JAX reference (for correctness check)
# ---------------------------------------------------------------------------
def bottleneck_reference(x_nchw, params):
    def bn(x, gamma, beta):
        mean = jnp.mean(x, axis=(0, 2, 3), keepdims=True)
        var = jnp.var(x, axis=(0, 2, 3), keepdims=True)
        xn = (x - mean) / jnp.sqrt(var + EPS)
        return xn * gamma.reshape(1, -1, 1, 1) + beta.reshape(1, -1, 1, 1)

    h = jax.nn.relu(bn(x_nchw, params["gamma1"], params["beta1"]))
    h = lax.conv_general_dilated(h, params["w1_oihw"], (1, 1), "VALID",
                                 dimension_numbers=("NCHW", "OIHW", "NCHW"))
    h = jax.nn.relu(bn(h, params["gamma2"], params["beta2"]))
    h = lax.conv_general_dilated(h, params["w2_oihw"], (1, 1), [(1, 1), (1, 1)],
                                 dimension_numbers=("NCHW", "OIHW", "NCHW"))
    return jnp.concatenate([x_nchw, h], axis=1)


# ---------------------------------------------------------------------------
def make_params(key, nChannels, growthRate):
    interChannels = 4 * growthRate
    Cip = _round_up(interChannels, LANES)
    Gp = _round_up(growthRate, LANES)
    k1, k2, k3, k4, k5, k6 = jax.random.split(key, 6)

    w1_oihw = 0.1 * jax.random.normal(k1, (interChannels, nChannels, 1, 1),
                                      jnp.float32)
    w2_oihw = 0.1 * jax.random.normal(k2, (growthRate, interChannels, 3, 3),
                                      jnp.float32)

    # kernel-facing, lane-dense (zero-padded) layouts
    w1 = jnp.transpose(w1_oihw[:, :, 0, 0], (1, 0))                # [C, Ci]
    w1p = jnp.zeros((nChannels, Cip), jnp.float32).at[:, :interChannels].set(w1)
    w2 = jnp.transpose(w2_oihw, (2, 3, 1, 0)).reshape(9, interChannels,
                                                      growthRate)  # [9, Ci, G]
    w2p = (jnp.zeros((9, Cip, Gp), jnp.float32)
           .at[:, :interChannels, :growthRate].set(w2))

    gamma1 = 1.0 + 0.1 * jax.random.normal(k3, (nChannels,), jnp.float32)
    beta1 = 0.1 * jax.random.normal(k4, (nChannels,), jnp.float32)
    gamma2 = 1.0 + 0.1 * jax.random.normal(k5, (interChannels,), jnp.float32)
    beta2 = 0.1 * jax.random.normal(k6, (interChannels,), jnp.float32)

    gamma2p = jnp.zeros((Cip,), jnp.float32).at[:interChannels].set(gamma2)
    beta2p = jnp.zeros((Cip,), jnp.float32).at[:interChannels].set(beta2)

    return {
        # kernel-facing layouts
        "w1p": w1p, "w2p": w2p, "gamma2p": gamma2p, "beta2p": beta2p,
        # original layouts (reference + BN1)
        "w1_oihw": w1_oihw, "w2_oihw": w2_oihw,
        "gamma1": gamma1, "beta1": beta1, "gamma2": gamma2, "beta2": beta2,
    }


if __name__ == "__main__":
    nChannels, growthRate = 4, 4
    N, H, W = 2, 16, 16

    key = jax.random.PRNGKey(0)
    kx, kp = jax.random.split(key)
    x = jax.random.normal(kx, (N, nChannels, H, W), jnp.float32)
    params = make_params(kp, nChannels, growthRate)

    ref = jax.block_until_ready(bottleneck_reference(x, params))

    # f32 path: tight numerical check against the f32 reference.
    out = jax.block_until_ready(bottleneck_forward(x, params, jnp.float32))
    assert out.shape == (N, nChannels + growthRate, H, W), out.shape
    err_f32 = float(jnp.max(jnp.abs(out - ref)))
    assert err_f32 < 1e-2, f"f32 max abs error {err_f32}"

    # bf16 matmul operands + bf16 intermediate (v6e/v7x MXU fast path); looser
    # tolerance against the f32 reference.
    out_bf16 = jax.block_until_ready(bottleneck_forward(x, params, jnp.bfloat16))
    err_bf16 = float(jnp.max(jnp.abs(out_bf16 - ref)))
    assert err_bf16 < 1e-1, f"bf16 max abs error {err_bf16}"

    print("KERNEL_OK")
</pallas_src>

<mosaic_0001>
module attributes {stable_mosaic.version = 11 : i64} {
  func.func @kernel(%arg0: i32, %arg1: memref<512x4xf32, #tpu.memory_space<vmem>>, %arg2: memref<1x4xf32, #tpu.memory_space<vmem>>, %arg3: memref<1x4xf32, #tpu.memory_space<vmem>>, %arg4: memref<4x128xf32, #tpu.memory_space<vmem>>, %arg5: memref<512x128xf32, #tpu.memory_space<vmem>>, %arg6: memref<8x128xf32, #tpu.memory_space<vmem>>, %arg7: memref<8x128xf32, #tpu.memory_space<vmem>>) attributes {dimension_semantics = [#tpu.dimension_semantics<parallel>], iteration_bounds = array<i64: 1>, scalar_prefetch = 0 : i64, scratch_operands = 0 : i64, tpu.core_type = #tpu.core_type<tc>, window_params = [{transform_indices = @transform_0, window_bounds = array<i64: 512, 4>}, {pipeline_mode = #tpu.pipeline_mode<synchronous>, transform_indices = @transform_1, window_bounds = array<i64: 1, 4>}, {pipeline_mode = #tpu.pipeline_mode<synchronous>, transform_indices = @transform_2, window_bounds = array<i64: 1, 4>}, {pipeline_mode = #tpu.pipeline_mode<synchronous>, transform_indices = @transform_3, window_bounds = array<i64: 4, 128>}, {transform_indices = @transform_4, window_bounds = array<i64: 512, 128>}, {transform_indices = @transform_5, window_bounds = array<i64: 8, 128>}, {transform_indices = @transform_6, window_bounds = array<i64: 8, 128>}]} {
    %c0 = arith.constant 0 : index
    %c0_0 = arith.constant 0 : index
    %0 = vector.load %arg1[%c0, %c0_0] : memref<512x4xf32, #tpu.memory_space<vmem>>, vector<512x4xf32>
    %c0_1 = arith.constant 0 : index
    %c0_2 = arith.constant 0 : index
    %1 = vector.load %arg2[%c0_1, %c0_2] : memref<1x4xf32, #tpu.memory_space<vmem>>, vector<1x4xf32>
    %2 = vector.broadcast %1 : vector<1x4xf32> to vector<512x4xf32>
    %3 = arith.mulf %0, %2 : vector<512x4xf32>
    %c0_3 = arith.constant 0 : index
    %c0_4 = arith.constant 0 : index
    %4 = vector.load %arg3[%c0_3, %c0_4] : memref<1x4xf32, #tpu.memory_space<vmem>>, vector<1x4xf32>
    %5 = vector.broadcast %4 : vector<1x4xf32> to vector<512x4xf32>
    %6 = arith.addf %3, %5 : vector<512x4xf32>
    %cst = arith.constant 0.000000e+00 : f32
    %7 = vector.broadcast %cst : f32 to vector<512x4xf32>
    %8 = arith.maximumf %6, %7 : vector<512x4xf32>
    %c0_5 = arith.constant 0 : index
    %c0_6 = arith.constant 0 : index
    %9 = vector.load %arg4[%c0_5, %c0_6] : memref<4x128xf32, #tpu.memory_space<vmem>>, vector<4x128xf32>
    %cst_7 = arith.constant dense<0.000000e+00> : vector<512x128xf32>
    %10 = tpu.matmul %8, %9, %cst_7 {dimension_numbers = #tpu.dot_dimension_numbers<[1], [0], [0], [1], [0, 0, 1, 1], [], []>} : vector<512x4xf32>, vector<4x128xf32>, vector<512x128xf32> -> vector<512x128xf32>
    %c0_8 = arith.constant 0 : index
    %c0_9 = arith.constant 0 : index
    %11 = vector.load %arg5[%c0_8, %c0_9] : memref<512x128xf32, #tpu.memory_space<vmem>>, vector<512x128xf32>
    tpu.vector_store %arg5[%c0_8, %c0_9], %10 {strides = array<i32>} : memref<512x128xf32, #tpu.memory_space<vmem>>, vector<512x128xf32>,
    %12 = vector.shape_cast %10 : vector<512x128xf32> to vector<64x8x128xf32>
    %cst_10 = arith.constant dense<0.000000e+00> : vector<8x128xf32>
    %13 = vector.multi_reduction <add>, %12, %cst_10 [0] : vector<64x8x128xf32> to vector<8x128xf32>
    %c0_11 = arith.constant 0 : index
    %c0_12 = arith.constant 0 : index
    %14 = vector.load %arg6[%c0_11, %c0_12] : memref<8x128xf32, #tpu.memory_space<vmem>>, vector<8x128xf32>
    tpu.vector_store %arg6[%c0_11, %c0_12], %13 {strides = array<i32>} : memref<8x128xf32, #tpu.memory_space<vmem>>, vector<8x128xf32>,
    %15 = arith.mulf %12, %12 : vector<64x8x128xf32>
    %cst_13 = arith.constant dense<0.000000e+00> : vector<8x128xf32>
    %16 = vector.multi_reduction <add>, %15, %cst_13 [0] : vector<64x8x128xf32> to vector<8x128xf32>
    %c0_14 = arith.constant 0 : index
    %c0_15 = arith.constant 0 : index
    %17 = vector.load %arg7[%c0_14, %c0_15] : memref<8x128xf32, #tpu.memory_space<vmem>>, vector<8x128xf32>
    tpu.vector_store %arg7[%c0_14, %c0_15], %16 {strides = array<i32>} : memref<8x128xf32, #tpu.memory_space<vmem>>, vector<8x128xf32>,
    return
  }
  func.func @transform_0(%arg0: i32) -> (i32, i32) {
    %c0_i32 = arith.constant 0 : i32
    %c0_i32_0 = arith.constant 0 : i32
    return %arg0, %c0_i32 : i32, i32
  }
  func.func @transform_1(%arg0: i32) -> (i32, i32) {
    %c0_i32 = arith.constant 0 : i32
    %c0_i32_0 = arith.constant 0 : i32
    %c0_i32_1 = arith.constant 0 : i32
    return %c0_i32, %c0_i32_0 : i32, i32
  }
  func.func @transform_2(%arg0: i32) -> (i32, i32) {
    %c0_i32 = arith.constant 0 : i32
    %c0_i32_0 = arith.constant 0 : i32
    %c0_i32_1 = arith.constant 0 : i32
    return %c0_i32, %c0_i32_0 : i32, i32
  }
  func.func @transform_3(%arg0: i32) -> (i32, i32) {
    %c0_i32 = arith.constant 0 : i32
    %c0_i32_0 = arith.constant 0 : i32
    %c0_i32_1 = arith.constant 0 : i32
    return %c0_i32, %c0_i32_0 : i32, i32
  }
  func.func @transform_4(%arg0: i32) -> (i32, i32) {
    %c0_i32 = arith.constant 0 : i32
    %c0_i32_0 = arith.constant 0 : i32
    return %arg0, %c0_i32 : i32, i32
  }
  func.func @transform_5(%arg0: i32) -> (i32, i32) {
    %c0_i32 = arith.constant 0 : i32
    %c0_i32_0 = arith.constant 0 : i32
    return %arg0, %c0_i32 : i32, i32
  }
  func.func @transform_6(%arg0: i32) -> (i32, i32) {
    %c0_i32 = arith.constant 0 : i32
    %c0_i32_0 = arith.constant 0 : i32
    return %arg0, %c0_i32 : i32, i32
  }
}

</mosaic_0001>

<llo_original>
// kernel: tpu_custom_call.1
$region0: #{tpu_custom_call.1}
  #allocation0 [shape = 'u32[]', space=smem, size = 0x4, offset = 0x4, fixed_abs, tag = 'smem constant byte address 0x4 - core index']
  #allocation1 [shape = 'u32[144,128]{1,0:T(1,128)}', space=vmem, size = 0x12000, scoped, tag = 'internal scratch']
  %s0 = inlined_call_operand.vmem [shape: f32[512,4], index: 0, kind: input, shape index: {}]
  %s1 = inlined_call_operand.vmem [shape: f32[1,4], index: 1, kind: input, shape index: {}]
  %s2 = inlined_call_operand.vmem [shape: f32[1,4], index: 2, kind: input, shape index: {}]
  %s3 = inlined_call_operand.vmem [shape: f32[4,128], index: 3, kind: input, shape index: {}]
  %s4 = inlined_call_operand.hbm [shape: f32[512,128], index: 4, kind: output, shape index: {0}]
  %s5 = inlined_call_operand.hbm [shape: f32[8,128], index: 5, kind: output, shape index: {1}]
  %s6 = inlined_call_operand.hbm [shape: f32[8,128], index: 6, kind: output, shape index: {2}]
  %7 = xla_tuple %s4, %s5, %s6
  %s8 = sld [smem:[#allocation0]]
  $region42: #{tpu_custom_call.1} parent=0
    _
  %s10 = ssub.s32 1, %s8
  %s11 = scalar_select 0, %s10, %s8
  $region1: #{tpu_custom_call.1} parent=0
    #allocation2 [shape = 'u8[262144]{0}', space=vmem, size = 0x40000, scoped, tag = 'output window, operand 0, single buffered']
    #allocation3 [shape = 's32[1]{0}', space=sflag, size = 0x4, scoped, tag = 'scoped memory for tpu_custom_call.1']
    #allocation4 [shape = 'u8[4096]{0}', space=vmem, size = 0x1000, scoped, tag = 'output window, operand 1, single buffered']
    #allocation5 [shape = 's32[1]{0}', space=sflag, size = 0x4, scoped, tag = 'scoped memory for tpu_custom_call.1']
    #allocation6 [shape = 'u8[4096]{0}', space=vmem, size = 0x1000, scoped, tag = 'output window, operand 2, single buffered']
    %12 = vsyncpa [#allocation3], 0
    %13 = vsyncpa [#allocation5], 0
    // Predicated region
    $region2: #{tpu_custom_call.1} parent=1 // pred_check
      _
    $region3: #{tpu_custom_call.1} parent=1 // pred_check_branch
      %15 = sbr.rel (0) target = $region5
    $region4: #{tpu_custom_call.1} parent=1 // pred_region
      _
    $region5: #{tpu_custom_call.1} parent=1 // pred_fallthru
      _
    // Predicated region
    $region6: #{tpu_custom_call.1} parent=1 // pred_check
      _
    $region7: #{tpu_custom_call.1} parent=1 // pred_check_branch
      %17 = sbr.rel (0) target = $region9
    $region8: #{tpu_custom_call.1} parent=1 // pred_region
      _
    $region9: #{tpu_custom_call.1} parent=1 // pred_fallthru
      _
    // Predicated region
    $region10: #{tpu_custom_call.1} parent=1 // pred_check
      _
    $region11: #{tpu_custom_call.1} parent=1 // pred_check_branch
      %19 = sbr.rel (0) target = $region13
    $region12: #{tpu_custom_call.1} parent=1 // pred_region
      _
    $region13: #{tpu_custom_call.1} parent=1 // pred_fallthru
      _
    // Predicated region
    $region14: #{tpu_custom_call.1} parent=1 // pred_check
      _
    $region15: #{tpu_custom_call.1} parent=1 // pred_check_branch
      %21 = sbr.rel (0) target = $region17
    $region16: #{tpu_custom_call.1} parent=1 // pred_region
      _
    $region17: #{tpu_custom_call.1} parent=1 // pred_fallthru
      _
    %v22 = vld [vmem:[%s0] sm:$0xff]
    %v23 = vld [vmem:[%s0 + $0x8] sm:$0xff]
    %v24 = vld [vmem:[%s0 + $0x10] sm:$0xff]
    %v25 = vld [vmem:[%s0 + $0x18] sm:$0xff]
    %v26 = vld [vmem:[%s0 + $0x20] sm:$0xff]
    %v27 = vld [vmem:[%s0 + $0x28] sm:$0xff]
    %v28 = vld [vmem:[%s0 + $0x30] sm:$0xff]
    %v29 = vld [vmem:[%s0 + $0x38] sm:$0xff]
    %v30 = vld [vmem:[%s0 + $0x40] sm:$0xff]
    %v31 = vld [vmem:[%s0 + $0x48] sm:$0xff]
    %v32 = vld [vmem:[%s0 + $0x50] sm:$0xff]
    %v33 = vld [vmem:[%s0 + $0x58] sm:$0xff]
    %v34 = vld [vmem:[%s0 + $0x60] sm:$0xff]
    %v35 = vld [vmem:[%s0 + $0x68] sm:$0xff]
    %v36 = vld [vmem:[%s0 + $0x70] sm:$0xff]
    %v37 = vld [vmem:[%s0 + $0x78] sm:$0xff]
    %v38 = vld [vmem:[%s0 + $0x80] sm:$0xff]
    %v39 = vld [vmem:[%s0 + $0x88] sm:$0xff]
    %v40 = vld [vmem:[%s0 + $0x90] sm:$0xff]
    %v41 = vld [vmem:[%s0 + $0x98] sm:$0xff]
    %v42 = vld [vmem:[%s0 + $0xa0] sm:$0xff]
    %v43 = vld [vmem:[%s0 + $0xa8] sm:$0xff]
    %v44 = vld [vmem:[%s0 + $0xb0] sm:$0xff]
    %v45 = vld [vmem:[%s0 + $0xb8] sm:$0xff]
    %v46 = vld [vmem:[%s0 + $0xc0] sm:$0xff]
    %v47 = vld [vmem:[%s0 + $0xc8] sm:$0xff]
    %v48 = vld [vmem:[%s0 + $0xd0] sm:$0xff]
    %v49 = vld [vmem:[%s0 + $0xd8] sm:$0xff]
    %v50 = vld [vmem:[%s0 + $0xe0] sm:$0xff]
    %v51 = vld [vmem:[%s0 + $0xe8] sm:$0xff]
    %v52 = vld [vmem:[%s0 + $0xf0] sm:$0xff]
    %v53 = vld [vmem:[%s0 + $0xf8] sm:$0xff]
    %v54 = vld [vmem:[%s0 + $0x100] sm:$0xff]
    %v55 = vld [vmem:[%s0 + $0x108] sm:$0xff]
    %v56 = vld [vmem:[%s0 + $0x110] sm:$0xff]
    %v57 = vld [vmem:[%s0 + $0x118] sm:$0xff]
    %v58 = vld [vmem:[%s0 + $0x120] sm:$0xff]
    %v59 = vld [vmem:[%s0 + $0x128] sm:$0xff]
    %v60 = vld [vmem:[%s0 + $0x130] sm:$0xff]
    %v61 = vld [vmem:[%s0 + $0x138] sm:$0xff]
    %v62 = vld [vmem:[%s0 + $0x140] sm:$0xff]
    %v63 = vld [vmem:[%s0 + $0x148] sm:$0xff]
    %v64 = vld [vmem:[%s0 + $0x150] sm:$0xff]
    %v65 = vld [vmem:[%s0 + $0x158] sm:$0xff]
    %v66 = vld [vmem:[%s0 + $0x160] sm:$0xff]
    %v67 = vld [vmem:[%s0 + $0x168] sm:$0xff]
    %v68 = vld [vmem:[%s0 + $0x170] sm:$0xff]
    %v69 = vld [vmem:[%s0 + $0x178] sm:$0xff]
    %v70 = vld [vmem:[%s0 + $0x180] sm:$0xff]
    %v71 = vld [vmem:[%s0 + $0x188] sm:$0xff]
    %v72 = vld [vmem:[%s0 + $0x190] sm:$0xff]
    %v73 = vld [vmem:[%s0 + $0x198] sm:$0xff]
    %v74 = vld [vmem:[%s0 + $0x1a0] sm:$0xff]
    %v75 = vld [vmem:[%s0 + $0x1a8] sm:$0xff]
    %v76 = vld [vmem:[%s0 + $0x1b0] sm:$0xff]
    %v77 = vld [vmem:[%s0 + $0x1b8] sm:$0xff]
    %v78 = vld [vmem:[%s0 + $0x1c0] sm:$0xff]
    %v79 = vld [vmem:[%s0 + $0x1c8] sm:$0xff]
    %v80 = vld [vmem:[%s0 + $0x1d0] sm:$0xff]
    %v81 = vld [vmem:[%s0 + $0x1d8] sm:$0xff]
    %v82 = vld [vmem:[%s0 + $0x1e0] sm:$0xff]
    %v83 = vld [vmem:[%s0 + $0x1e8] sm:$0xff]
    %v84 = vld [vmem:[%s0 + $0x1f0] sm:$0xff]
    %v85 = vld [vmem:[%s0 + $0x1f8] sm:$0xff]
    %v86 = vld [vmem:[%s1] sm:$0x1]
    %v88 = vlaneseq
    %v89 = vshrl.u32 %v88, 7
    %v90 = vsub.s32 0, %v89
    %v91 = vrot.slane %v86, %v90
    %v93 = vmul.f32 %v22, %v91
    %v94 = vmul.f32 %v23, %v91
    %v95 = vmul.f32 %v24, %v91
    %v96 = vmul.f32 %v25, %v91
    %v97 = vmul.f32 %v26, %v91
    %v98 = vmul.f32 %v27, %v91
    %v99 = vmul.f32 %v28, %v91
    %v100 = vmul.f32 %v29, %v91
    %v101 = vmul.f32 %v30, %v91
    %v102 = vmul.f32 %v31, %v91
    %v103 = vmul.f32 %v32, %v91
    %v104 = vmul.f32 %v33, %v91
    %v105 = vmul.f32 %v34, %v91
    %v106 = vmul.f32 %v35, %v91
    %v107 = vmul.f32 %v36, %v91
    %v108 = vmul.f32 %v37, %v91
    %v109 = vmul.f32 %v38, %v91
    %v110 = vmul.f32 %v39, %v91
    %v111 = vmul.f32 %v40, %v91
    %v112 = vmul.f32 %v41, %v91
    %v113 = vmul.f32 %v42, %v91
    %v114 = vmul.f32 %v43, %v91
    %v115 = vmul.f32 %v44, %v91
    %v116 = vmul.f32 %v45, %v91
    %v117 = vmul.f32 %v46, %v91
    %v118 = vmul.f32 %v47, %v91
    %v119 = vmul.f32 %v48, %v91
    %v120 = vmul.f32 %v49, %v91
    %v121 = vmul.f32 %v50, %v91
    %v122 = vmul.f32 %v51, %v91
    %v123 = vmul.f32 %v52, %v91
    %v124 = vmul.f32 %v53, %v91
    %v125 = vmul.f32 %v54, %v91
    %v126 = vmul.f32 %v55, %v91
    %v127 = vmul.f32 %v56, %v91
    %v128 = vmul.f32 %v57, %v91
    %v129 = vmul.f32 %v58, %v91
    %v130 = vmul.f32 %v59, %v91
    %v131 = vmul.f32 %v60, %v91
    %v132 = vmul.f32 %v61, %v91
    %v133 = vmul.f32 %v62, %v91
    %v134 = vmul.f32 %v63, %v91
    %v135 = vmul.f32 %v64, %v91
    %v136 = vmul.f32 %v65, %v91
    %v137 = vmul.f32 %v66, %v91
    %v138 = vmul.f32 %v67, %v91
    %v139 = vmul.f32 %v68, %v91
    %v140 = vmul.f32 %v69, %v91
    %v141 = vmul.f32 %v70, %v91
    %v142 = vmul.f32 %v71, %v91
    %v143 = vmul.f32 %v72, %v91
    %v144 = vmul.f32 %v73, %v91
    %v145 = vmul.f32 %v74, %v91
    %v146 = vmul.f32 %v75, %v91
    %v147 = vmul.f32 %v76, %v91
    %v148 = vmul.f32 %v77, %v91
    %v149 = vmul.f32 %v78, %v91
    %v150 = vmul.f32 %v79, %v91
    %v151 = vmul.f32 %v80, %v91
    %v152 = vmul.f32 %v81, %v91
    %v153 = vmul.f32 %v82, %v91
    %v154 = vmul.f32 %v83, %v91
    %v155 = vmul.f32 %v84, %v91
    %v156 = vmul.f32 %v85, %v91
    %v157 = vld [vmem:[%s2] sm:$0x1]
    %v159 = vlaneseq
    %v160 = vshrl.u32 %v159, 7
    %v161 = vsub.s32 0, %v160
    %v162 = vrot.slane %v157, %v161
    %v164 = vadd.f32 %v93, %v162
    %v165 = vadd.f32 %v94, %v162
    %v166 = vadd.f32 %v95, %v162
    %v167 = vadd.f32 %v96, %v162
    %v168 = vadd.f32 %v97, %v162
    %v169 = vadd.f32 %v98, %v162
    %v170 = vadd.f32 %v99, %v162
    %v171 = vadd.f32 %v100, %v162
    %v172 = vadd.f32 %v101, %v162
    %v173 = vadd.f32 %v102, %v162
    %v174 = vadd.f32 %v103, %v162
    %v175 = vadd.f32 %v104, %v162
    %v176 = vadd.f32 %v105, %v162
    %v177 = vadd.f32 %v106, %v162
    %v178 = vadd.f32 %v107, %v162
    %v179 = vadd.f32 %v108, %v162
    %v180 = vadd.f32 %v109, %v162
    %v181 = vadd.f32 %v110, %v162
    %v182 = vadd.f32 %v111, %v162
    %v183 = vadd.f32 %v112, %v162
    %v184 = vadd.f32 %v113, %v162
    %v185 = vadd.f32 %v114, %v162
    %v186 = vadd.f32 %v115, %v162
    %v187 = vadd.f32 %v116, %v162
    %v188 = vadd.f32 %v117, %v162
    %v189 = vadd.f32 %v118, %v162
    %v190 = vadd.f32 %v119, %v162
    %v191 = vadd.f32 %v120, %v162
    %v192 = vadd.f32 %v121, %v162
    %v193 = vadd.f32 %v122, %v162
    %v194 = vadd.f32 %v123, %v162
    %v195 = vadd.f32 %v124, %v162
    %v196 = vadd.f32 %v125, %v162
    %v197 = vadd.f32 %v126, %v162
    %v198 = vadd.f32 %v127, %v162
    %v199 = vadd.f32 %v128, %v162
    %v200 = vadd.f32 %v129, %v162
    %v201 = vadd.f32 %v130, %v162
    %v202 = vadd.f32 %v131, %v162
    %v203 = vadd.f32 %v132, %v162
    %v204 = vadd.f32 %v133, %v162
    %v205 = vadd.f32 %v134, %v162
    %v206 = vadd.f32 %v135, %v162
    %v207 = vadd.f32 %v136, %v162
    %v208 = vadd.f32 %v137, %v162
    %v209 = vadd.f32 %v138, %v162
    %v210 = vadd.f32 %v139, %v162
    %v211 = vadd.f32 %v140, %v162
    %v212 = vadd.f32 %v141, %v162
    %v213 = vadd.f32 %v142, %v162
    %v214 = vadd.f32 %v143, %v162
    %v215 = vadd.f32 %v144, %v162
    %v216 = vadd.f32 %v145, %v162
    %v217 = vadd.f32 %v146, %v162
    %v218 = vadd.f32 %v147, %v162
    %v219 = vadd.f32 %v148, %v162
    %v220 = vadd.f32 %v149, %v162
    %v221 = vadd.f32 %v150, %v162
    %v222 = vadd.f32 %v151, %v162
    %v223 = vadd.f32 %v152, %v162
    %v224 = vadd.f32 %v153, %v162
    %v225 = vadd.f32 %v154, %v162
    %v226 = vadd.f32 %v155, %v162
    %v227 = vadd.f32 %v156, %v162
    %v228 = vmax.f32 %v164, 0.0
    %v229 = vmax.f32 %v165, 0.0
    %v230 = vmax.f32 %v166, 0.0
    %v231 = vmax.f32 %v167, 0.0
    %v232 = vmax.f32 %v168, 0.0
    %v233 = vmax.f32 %v169, 0.0
    %v234 = vmax.f32 %v170, 0.0
    %v235 = vmax.f32 %v171, 0.0
    %v236 = vmax.f32 %v172, 0.0
    %v237 = vmax.f32 %v173, 0.0
    %v238 = vmax.f32 %v174, 0.0
    %v239 = vmax.f32 %v175, 0.0
    %v240 = vmax.f32 %v176, 0.0
    %v241 = vmax.f32 %v177, 0.0
    %v242 = vmax.f32 %v178, 0.0
    %v243 = vmax.f32 %v179, 0.0
    %v244 = vmax.f32 %v180, 0.0
    %v245 = vmax.f32 %v181, 0.0
    %v246 = vmax.f32 %v182, 0.0
    %v247 = vmax.f32 %v183, 0.0
    %v248 = vmax.f32 %v184, 0.0
    %v249 = vmax.f32 %v185, 0.0
    %v250 = vmax.f32 %v186, 0.0
    %v251 = vmax.f32 %v187, 0.0
    %v252 = vmax.f32 %v188, 0.0
    %v253 = vmax.f32 %v189, 0.0
    %v254 = vmax.f32 %v190, 0.0
    %v255 = vmax.f32 %v191, 0.0
    %v256 = vmax.f32 %v192, 0.0
    %v257 = vmax.f32 %v193, 0.0
    %v258 = vmax.f32 %v194, 0.0
    %v259 = vmax.f32 %v195, 0.0
    %v260 = vmax.f32 %v196, 0.0
    %v261 = vmax.f32 %v197, 0.0
    %v262 = vmax.f32 %v198, 0.0
    %v263 = vmax.f32 %v199, 0.0
    %v264 = vmax.f32 %v200, 0.0
    %v265 = vmax.f32 %v201, 0.0
    %v266 = vmax.f32 %v202, 0.0
    %v267 = vmax.f32 %v203, 0.0
    %v268 = vmax.f32 %v204, 0.0
    %v269 = vmax.f32 %v205, 0.0
    %v270 = vmax.f32 %v206, 0.0
    %v271 = vmax.f32 %v207, 0.0
    %v272 = vmax.f32 %v208, 0.0
    %v273 = vmax.f32 %v209, 0.0
    %v274 = vmax.f32 %v210, 0.0
    %v275 = vmax.f32 %v211, 0.0
    %v276 = vmax.f32 %v212, 0.0
    %v277 = vmax.f32 %v213, 0.0
    %v278 = vmax.f32 %v214, 0.0
    %v279 = vmax.f32 %v215, 0.0
    %v280 = vmax.f32 %v216, 0.0
    %v281 = vmax.f32 %v217, 0.0
    %v282 = vmax.f32 %v218, 0.0
    %v283 = vmax.f32 %v219, 0.0
    %v284 = vmax.f32 %v220, 0.0
    %v285 = vmax.f32 %v221, 0.0
    %v286 = vmax.f32 %v222, 0.0
    %v287 = vmax.f32 %v223, 0.0
    %v288 = vmax.f32 %v224, 0.0
    %v289 = vmax.f32 %v225, 0.0
    %v290 = vmax.f32 %v226, 0.0
    %v291 = vmax.f32 %v227, 0.0
    %v292 = vld [vmem:[%s3] sm:$0xf]
    %vm293 = vcmask 31744
    %v295 = vsel %vm293, %v228, 0
    %v298 = vsel %vm293, %v229, 0
    %v301 = vsel %vm293, %v230, 0
    %v304 = vsel %vm293, %v231, 0
    %v307 = vsel %vm293, %v232, 0
    %v310 = vsel %vm293, %v233, 0
    %v313 = vsel %vm293, %v234, 0
    %v316 = vsel %vm293, %v235, 0
    %v319 = vsel %vm293, %v236, 0
    %v322 = vsel %vm293, %v237, 0
    %v325 = vsel %vm293, %v238, 0
    %v328 = vsel %vm293, %v239, 0
    %v331 = vsel %vm293, %v240, 0
    %v334 = vsel %vm293, %v241, 0
    %v337 = vsel %vm293, %v242, 0
    %v340 = vsel %vm293, %v243, 0
    %v343 = vsel %vm293, %v244, 0
    %v346 = vsel %vm293, %v245, 0
    %v349 = vsel %vm293, %v246, 0
    %v352 = vsel %vm293, %v247, 0
    %v355 = vsel %vm293, %v248, 0
    %v358 = vsel %vm293, %v249, 0
    %v361 = vsel %vm293, %v250, 0
    %v364 = vsel %vm293, %v251, 0
    %v367 = vsel %vm293, %v252, 0
    %v370 = vsel %vm293, %v253, 0
    %v373 = vsel %vm293, %v254, 0
    %v376 = vsel %vm293, %v255, 0
    %v379 = vsel %vm293, %v256, 0
    %v382 = vsel %vm293, %v257, 0
    %v385 = vsel %vm293, %v258, 0
    %v388 = vsel %vm293, %v259, 0
    %v391 = vsel %vm293, %v260, 0
    %v394 = vsel %vm293, %v261, 0
    %v397 = vsel %vm293, %v262, 0
    %v400 = vsel %vm293, %v263, 0
    %v403 = vsel %vm293, %v264, 0
    %v406 = vsel %vm293, %v265, 0
    %v409 = vsel %vm293, %v266, 0
    %v412 = vsel %vm293, %v267, 0
    %v415 = vsel %vm293, %v268, 0
    %v418 = vsel %vm293, %v269, 0
    %v421 = vsel %vm293, %v270, 0
    %v424 = vsel %vm293, %v271, 0
    %v427 = vsel %vm293, %v272, 0
    %v430 = vsel %vm293, %v273, 0
    %v433 = vsel %vm293, %v274, 0
    %v436 = vsel %vm293, %v275, 0
    %v439 = vsel %vm293, %v276, 0
    %v442 = vsel %vm293, %v277, 0
    %v445 = vsel %vm293, %v278, 0
    %v448 = vsel %vm293, %v279, 0
    %v451 = vsel %vm293, %v280, 0
    %v454 = vsel %vm293, %v281, 0
    %v457 = vsel %vm293, %v282, 0
    %v460 = vsel %vm293, %v283, 0
    %v463 = vsel %vm293, %v284, 0
    %v466 = vsel %vm293, %v285, 0
    %v469 = vsel %vm293, %v286, 0
    %v472 = vsel %vm293, %v287, 0
    %v475 = vsel %vm293, %v288, 0
    %v478 = vsel %vm293, %v289, 0
    %v481 = vsel %vm293, %v290, 0
    %v484 = vsel %vm293, %v291, 0
    %vm486 = vcmask 1043456
    %v488 = vsel %vm486, %v292, 0
    %490 = vmatprep.subr.mxu0 0.0
    %491 = vmatpush1.msra.mxu0 %v488
    %492 = vmatprep.subr.mxu0 0.0
    %493 = vmatpush1.msra.mxu0 0.0
    %494 = vmatprep.subr.mxu0 0.0
    %495 = vmatpush1.msra.mxu0 0.0
    %496 = vmatprep.subr.mxu0 0.0
    %497 = vmatpush1.msra.mxu0 0.0
    %498 = vmatprep.subr.mxu0 0.0
    %499 = vmatpush1.msra.mxu0 0.0
    %500 = vmatprep.subr.mxu0 0.0
    %501 = vmatpush1.msra.mxu0 0.0
    %502 = vmatprep.subr.mxu0 0.0
    %503 = vmatpush1.msra.mxu0 0.0
    %504 = vmatprep.subr.mxu0 0.0
    %505 = vmatpush1.msra.mxu0 0.0
    %506 = vmatprep.subr.mxu0 0.0
    %507 = vmatpush1.msra.mxu0 0.0
    %508 = vmatprep.subr.mxu0 0.0
    %509 = vmatpush1.msra.mxu0 0.0
    %510 = vmatprep.subr.mxu0 0.0
    %511 = vmatpush1.msra.mxu0 0.0
    %512 = vmatprep.subr.mxu0 0.0
    %513 = vmatpush1.msra.mxu0 0.0
    %514 = vmatprep.subr.mxu0 0.0
    %515 = vmatpush1.msra.mxu0 0.0
    %516 = vmatprep.subr.mxu0 0.0
    %517 = vmatpush1.msra.mxu0 0.0
    %518 = vmatprep.subr.mxu0 0.0
    %519 = vmatpush1.msra.mxu0 0.0
    %520 = vmatprep.subr.mxu0 0.0
    %521 = vmatpush1.msra.mxu0 0.0
    %522 = vmatprep.subr.mxu0 0.0
    %523 = vmatpush1.msra.mxu0 0.0
    %524 = vmatprep.subr.mxu0 0.0
    %525 = vmatpush1.msra.mxu0 0.0
    %526 = vmatprep.subr.mxu0 0.0
    %527 = vmatpush1.msra.mxu0 0.0
    %528 = vmatprep.subr.mxu0 0.0
    %529 = vmatpush1.msra.mxu0 0.0
    %530 = vmatprep.subr.mxu0 0.0
    %531 = vmatpush1.msra.mxu0 0.0
    %532 = vmatprep.subr.mxu0 0.0
    %533 = vmatpush1.msra.mxu0 0.0
    %534 = vmatprep.subr.mxu0 0.0
    %535 = vmatpush1.msra.mxu0 0.0
    %536 = vmatprep.subr.mxu0 0.0
    %537 = vmatpush1.msra.mxu0 0.0
    %538 = vmatprep.subr.mxu0 0.0
    %539 = vmatpush1.msra.mxu0 0.0
    %540 = vmatprep.subr.mxu0 0.0
    %541 = vmatpush1.msra.mxu0 0.0
    %542 = vmatprep.subr.mxu0 0.0
    %543 = vmatpush1.msra.mxu0 0.0
    %544 = vmatprep.subr.mxu0 0.0
    %545 = vmatpush1.msra.mxu0 0.0
    %546 = vmatprep.subr.mxu0 0.0
    %547 = vmatpush1.msra.mxu0 0.0
    %548 = vmatprep.subr.mxu0 0.0
    %549 = vmatpush1.msra.mxu0 0.0
    %550 = vmatprep.subr.mxu0 0.0
    %551 = vmatpush1.msra.mxu0 0.0
    %552 = vmatprep.subr.mxu0 0.0
    %553 = vmatpush1.msra.mxu0 0.0
    %554 = vmatprep.mubr.f32.mxu0 0.0
    %555 = vmatmul.mubr.f32.gmra.mrb[0].mxu0 %v295
    %v556 = vpop.f32.mrb[0].mxu0
    %v557 = vadd.f32 0.0, %v556
    %v558 = vpop.f32.mrb[0].mxu0
    %559 = vmatprep.mubr.f32.mxu0 0.0
    %560 = vmatmul.mubr.f32.gmra.mrb[0].mxu0 %v298
    %v561 = vpop.f32.mrb[0].mxu0
    %v562 = vadd.f32 0.0, %v561
    %v563 = vpop.f32.mrb[0].mxu0
    %564 = vmatprep.mubr.f32.mxu0 0.0
    %565 = vmatmul.mubr.f32.gmra.mrb[0].mxu0 %v301
    %v566 = vpop.f32.mrb[0].mxu0
    %v567 = vadd.f32 0.0, %v566
    %v568 = vpop.f32.mrb[0].mxu0
    %569 = vmatprep.mubr.f32.mxu0 0.0
    %570 = vmatmul.mubr.f32.gmra.mrb[0].mxu0 %v304
    %v571 = vpop.f32.mrb[0].mxu0
    %v572 = vadd.f32 0.0, %v571
    %v573 = vpop.f32.mrb[0].mxu0
    %574 = vmatprep.mubr.f32.mxu0 0.0
    %575 = vmatmul.mubr.f32.gmra.mrb[0].mxu0 %v307
    %v576 = vpop.f32.mrb[0].mxu0
    %v577 = vadd.f32 0.0, %v576
    %v578 = vpop.f32.mrb[0].mxu0
    %579 = vmatprep.mubr.f32.mxu0 0.0
    %580 = vmatmul.mubr.f32.gmra.mrb[0].mxu0 %v310
    %v581 = vpop.f32.mrb[0].mxu0
    %v582 = vadd.f32 0.0, %v581
    %v583 = vpop.f32.mrb[0].mxu0
    %584 = vmatprep.mubr.f32.mxu0 0.0
    %585 = vmatmul.mubr.f32.gmra.mrb[0].mxu0 %v313
    %v586 = vpop.f32.mrb[0].mxu0
    %v587 = vadd.f32 0.0, %v586
    %v588 = vpop.f32.mrb[0].mxu0
    %589 = vmatprep.mubr.f32.mxu0 0.0
    %590 = vmatmul.mubr.f32.gmra.mrb[0].mxu0 %v316
    %v591 = vpop.f32.mrb[0].mxu0
    %v592 = vadd.f32 0.0, %v591
    %v593 = vpop.f32.mrb[0].mxu0
    %594 = vmatprep.mubr.f32.mxu0 0.0
    %595 = vmatmul.mubr.f32.gmra.mrb[0].mxu0 %v319
    %v596 = vpop.f32.mrb[0].mxu0
    %v597 = vadd.f32 0.0, %v596
    %v598 = vpop.f32.mrb[0].mxu0
    %599 = vmatprep.mubr.f32.mxu0 0.0
    %600 = vmatmul.mubr.f32.gmra.mrb[0].mxu0 %v322
    %v601 = vpop.f32.mrb[0].mxu0
    %v602 = vadd.f32 0.0, %v601
    %v603 = vpop.f32.mrb[0].mxu0
    %604 = vmatprep.mubr.f32.mxu0 0.0
    %605 = vmatmul.mubr.f32.gmra.mrb[0].mxu0 %v325
    %v606 = vpop.f32.mrb[0].mxu0
    %v607 = vadd.f32 0.0, %v606
    %v608 = vpop.f32.mrb[0].mxu0
    %609 = vmatprep.mubr.f32.mxu0 0.0
    %610 = vmatmul.mubr.f32.gmra.mrb[0].mxu0 %v328
    %v611 = vpop.f32.mrb[0].mxu0
    %v612 = vadd.f32 0.0, %v611
    %v613 = vpop.f32.mrb[0].mxu0
    %614 = vmatprep.mubr.f32.mxu0 0.0
    %615 = vmatmul.mubr.f32.gmra.mrb[0].mxu0 %v331
    %v616 = vpop.f32.mrb[0].mxu0
    %v617 = vadd.f32 0.0, %v616
    %v618 = vpop.f32.mrb[0].mxu0
    %619 = vmatprep.mubr.f32.mxu0 0.0
    %620 = vmatmul.mubr.f32.gmra.mrb[0].mxu0 %v334
    %v621 = vpop.f32.mrb[0].mxu0
    %v622 = vadd.f32 0.0, %v621
    %v623 = vpop.f32.mrb[0].mxu0
    %624 = vmatprep.mubr.f32.mxu0 0.0
    %625 = vmatmul.mubr.f32.gmra.mrb[0].mxu0 %v337
    %v626 = vpop.f32.mrb[0].mxu0
    %v627 = vadd.f32 0.0, %v626
    %v628 = vpop.f32.mrb[0].mxu0
    %629 = vmatprep.mubr.f32.mxu0 0.0
    %630 = vmatmul.mubr.f32.gmra.mrb[0].mxu0 %v340
    %v631 = vpop.f32.mrb[0].mxu0
    %v632 = vadd.f32 0.0, %v631
    %v633 = vpop.f32.mrb[0].mxu0
    %634 = vmatprep.mubr.f32.mxu0 0.0
    %635 = vmatmul.mubr.f32.gmra.mrb[0].mxu0 %v343
    %v636 = vpop.f32.mrb[0].mxu0
    %v637 = vadd.f32 0.0, %v636
    %v638 = vpop.f32.mrb[0].mxu0
    %639 = vmatprep.mubr.f32.mxu0 0.0
    %640 = vmatmul.mubr.f32.gmra.mrb[0].mxu0 %v346
    %v641 = vpop.f32.mrb[0].mxu0
    %v642 = vadd.f32 0.0, %v641
    %v643 = vpop.f32.mrb[0].mxu0
    %644 = vmatprep.mubr.f32.mxu0 0.0
    %645 = vmatmul.mubr.f32.gmra.mrb[0].mxu0 %v349
    %v646 = vpop.f32.mrb[0].mxu0
    %v647 = vadd.f32 0.0, %v646
    %v648 = vpop.f32.mrb[0].mxu0
    %649 = vmatprep.mubr.f32.mxu0 0.0
    %650 = vmatmul.mubr.f32.gmra.mrb[0].mxu0 %v352
    %v651 = vpop.f32.mrb[0].mxu0
    %v652 = vadd.f32 0.0, %v651
    %v653 = vpop.f32.mrb[0].mxu0
    %654 = vmatprep.mubr.f32.mxu0 0.0
    %655 = vmatmul.mubr.f32.gmra.mrb[0].mxu0 %v355
    %v656 = vpop.f32.mrb[0].mxu0
    %v657 = vadd.f32 0.0, %v656
    %v658 = vpop.f32.mrb[0].mxu0
    %659 = vmatprep.mubr.f32.mxu0 0.0
    %660 = vmatmul.mubr.f32.gmra.mrb[0].mxu0 %v358
    %v661 = vpop.f32.mrb[0].mxu0
    %v662 = vadd.f32 0.0, %v661
    %v663 = vpop.f32.mrb[0].mxu0
    %664 = vmatprep.mubr.f32.mxu0 0.0
    %665 = vmatmul.mubr.f32.gmra.mrb[0].mxu0 %v361
    %v666 = vpop.f32.mrb[0].mxu0
    %v667 = vadd.f32 0.0, %v666
    %v668 = vpop.f32.mrb[0].mxu0
    %669 = vmatprep.mubr.f32.mxu0 0.0
    %670 = vmatmul.mubr.f32.gmra.mrb[0].mxu0 %v364
    %v671 = vpop.f32.mrb[0].mxu0
    %v672 = vadd.f32 0.0, %v671
    %v673 = vpop.f32.mrb[0].mxu0
    %674 = vmatprep.mubr.f32.mxu0 0.0
    %675 = vmatmul.mubr.f32.gmra.mrb[0].mxu0 %v367
    %v676 = vpop.f32.mrb[0].mxu0
    %v677 = vadd.f32 0.0, %v676
    %v678 = vpop.f32.mrb[0].mxu0
    %679 = vmatprep.mubr.f32.mxu0 0.0
    %680 = vmatmul.mubr.f32.gmra.mrb[0].mxu0 %v370
    %v681 = vpop.f32.mrb[0].mxu0
    %v682 = vadd.f32 0.0, %v681
    %v683 = vpop.f32.mrb[0].mxu0
    %684 = vmatprep.mubr.f32.mxu0 0.0
    %685 = vmatmul.mubr.f32.gmra.mrb[0].mxu0 %v373
    %v686 = vpop.f32.mrb[0].mxu0
    %v687 = vadd.f32 0.0, %v686
    %v688 = vpop.f32.mrb[0].mxu0
    %689 = vmatprep.mubr.f32.mxu0 0.0
    %690 = vmatmul.mubr.f32.gmra.mrb[0].mxu0 %v376
    %v691 = vpop.f32.mrb[0].mxu0
    %v692 = vadd.f32 0.0, %v691
    %v693 = vpop.f32.mrb[0].mxu0
    %694 = vmatprep.mubr.f32.mxu0 0.0
    %695 = vmatmul.mubr.f32.gmra.mrb[0].mxu0 %v379
    %v696 = vpop.f32.mrb[0].mxu0
    %v697 = vadd.f32 0.0, %v696
    %v698 = vpop.f32.mrb[0].mxu0
    %699 = vmatprep.mubr.f32.mxu0 0.0
    %700 = vmatmul.mubr.f32.gmra.mrb[0].mxu0 %v382
    %v701 = vpop.f32.mrb[0].mxu0
    %v702 = vadd.f32 0.0, %v701
    %v703 = vpop.f32.mrb[0].mxu0
    %704 = vmatprep.mubr.f32.mxu0 0.0
    %705 = vmatmul.mubr.f32.gmra.mrb[0].mxu0 %v385
    %v706 = vpop.f32.mrb[0].mxu0
    %v707 = vadd.f32 0.0, %v706
    %v708 = vpop.f32.mrb[0].mxu0
    %709 = vmatprep.mubr.f32.mxu0 0.0
    %710 = vmatmul.mubr.f32.gmra.mrb[0].mxu0 %v388
    %v711 = vpop.f32.mrb[0].mxu0
    %v712 = vadd.f32 0.0, %v711
    %v713 = vpop.f32.mrb[0].mxu0
    %714 = vmatprep.mubr.f32.mxu0 0.0
    %715 = vmatmul.mubr.f32.gmra.mrb[0].mxu0 %v391
    %v716 = vpop.f32.mrb[0].mxu0
    %v717 = vadd.f32 0.0, %v716
    %v718 = vpop.f32.mrb[0].mxu0
    %719 = vmatprep.mubr.f32.mxu0 0.0
    %720 = vmatmul.mubr.f32.gmra.mrb[0].mxu0 %v394
    %v721 = vpop.f32.mrb[0].mxu0
    %v722 = vadd.f32 0.0, %v721
    %v723 = vpop.f32.mrb[0].mxu0
    %724 = vmatprep.mubr.f32.mxu0 0.0
    %725 = vmatmul.mubr.f32.gmra.mrb[0].mxu0 %v397
    %v726 = vpop.f32.mrb[0].mxu0
    %v727 = vadd.f32 0.0, %v726
    %v728 = vpop.f32.mrb[0].mxu0
    %729 = vmatprep.mubr.f32.mxu0 0.0
    %730 = vmatmul.mubr.f32.gmra.mrb[0].mxu0 %v400
    %v731 = vpop.f32.mrb[0].mxu0
    %v732 = vadd.f32 0.0, %v731
    %v733 = vpop.f32.mrb[0].mxu0
    %734 = vmatprep.mubr.f32.mxu0 0.0
    %735 = vmatmul.mubr.f32.gmra.mrb[0].mxu0 %v403
    %v736 = vpop.f32.mrb[0].mxu0
    %v737 = vadd.f32 0.0, %v736
    %v738 = vpop.f32.mrb[0].mxu0
    %739 = vmatprep.mubr.f32.mxu0 0.0
    %740 = vmatmul.mubr.f32.gmra.mrb[0].mxu0 %v406
    %v741 = vpop.f32.mrb[0].mxu0
    %v742 = vadd.f32 0.0, %v741
    %v743 = vpop.f32.mrb[0].mxu0
    %744 = vmatprep.mubr.f32.mxu0 0.0
    %745 = vmatmul.mubr.f32.gmra.mrb[0].mxu0 %v409
    %v746 = vpop.f32.mrb[0].mxu0
    %v747 = vadd.f32 0.0, %v746
    %v748 = vpop.f32.mrb[0].mxu0
    %749 = vmatprep.mubr.f32.mxu0 0.0
    %750 = vmatmul.mubr.f32.gmra.mrb[0].mxu0 %v412
    %v751 = vpop.f32.mrb[0].mxu0
    %v752 = vadd.f32 0.0, %v751
    %v753 = vpop.f32.mrb[0].mxu0
    %754 = vmatprep.mubr.f32.mxu0 0.0
    %755 = vmatmul.mubr.f32.gmra.mrb[0].mxu0 %v415
    %v756 = vpop.f32.mrb[0].mxu0
    %v757 = vadd.f32 0.0, %v756
    %v758 = vpop.f32.mrb[0].mxu0
    %759 = vmatprep.mubr.f32.mxu0 0.0
    %760 = vmatmul.mubr.f32.gmra.mrb[0].mxu0 %v418
    %v761 = vpop.f32.mrb[0].mxu0
    %v762 = vadd.f32 0.0, %v761
    %v763 = vpop.f32.mrb[0].mxu0
    %764 = vmatprep.mubr.f32.mxu0 0.0
    %765 = vmatmul.mubr.f32.gmra.mrb[0].mxu0 %v421
    %v766 = vpop.f32.mrb[0].mxu0
    %v767 = vadd.f32 0.0, %v766
    %v768 = vpop.f32.mrb[0].mxu0
    %769 = vmatprep.mubr.f32.mxu0 0.0
    %770 = vmatmul.mubr.f32.gmra.mrb[0].mxu0 %v424
    %v771 = vpop.f32.mrb[0].mxu0
    %v772 = vadd.f32 0.0, %v771
    %v773 = vpop.f32.mrb[0].mxu0
    %774 = vmatprep.mubr.f32.mxu0 0.0
    %775 = vmatmul.mubr.f32.gmra.mrb[0].mxu0 %v427
    %v776 = vpop.f32.mrb[0].mxu0
    %v777 = vadd.f32 0.0, %v776
    %v778 = vpop.f32.mrb[0].mxu0
    %779 = vmatprep.mubr.f32.mxu0 0.0
    %780 = vmatmul.mubr.f32.gmra.mrb[0].mxu0 %v430
    %v781 = vpop.f32.mrb[0].mxu0
    %v782 = vadd.f32 0.0, %v781
    %v783 = vpop.f32.mrb[0].mxu0
    %784 = vmatprep.mubr.f32.mxu0 0.0
    %785 = vmatmul.mubr.f32.gmra.mrb[0].mxu0 %v433
    %v786 = vpop.f32.mrb[0].mxu0
    %v787 = vadd.f32 0.0, %v786
    %v788 = vpop.f32.mrb[0].mxu0
    %789 = vmatprep.mubr.f32.mxu0 0.0
    %790 = vmatmul.mubr.f32.gmra.mrb[0].mxu0 %v436
    %v791 = vpop.f32.mrb[0].mxu0
    %v792 = vadd.f32 0.0, %v791
    %v793 = vpop.f32.mrb[0].mxu0
    %794 = vmatprep.mubr.f32.mxu0 0.0
    %795 = vmatmul.mubr.f32.gmra.mrb[0].mxu0 %v439
    %v796 = vpop.f32.mrb[0].mxu0
    %v797 = vadd.f32 0.0, %v796
    %v798 = vpop.f32.mrb[0].mxu0
    %799 = vmatprep.mubr.f32.mxu0 0.0
    %800 = vmatmul.mubr.f32.gmra.mrb[0].mxu0 %v442
    %v801 = vpop.f32.mrb[0].mxu0
    %v802 = vadd.f32 0.0, %v801
    %v803 = vpop.f32.mrb[0].mxu0
    %804 = vmatprep.mubr.f32.mxu0 0.0
    %805 = vmatmul.mubr.f32.gmra.mrb[0].mxu0 %v445
    %v806 = vpop.f32.mrb[0].mxu0
    %v807 = vadd.f32 0.0, %v806
    %v808 = vpop.f32.mrb[0].mxu0
    %809 = vmatprep.mubr.f32.mxu0 0.0
    %810 = vmatmul.mubr.f32.gmra.mrb[0].mxu0 %v448
    %v811 = vpop.f32.mrb[0].mxu0
    %v812 = vadd.f32 0.0, %v811
    %v813 = vpop.f32.mrb[0].mxu0
    %814 = vmatprep.mubr.f32.mxu0 0.0
    %815 = vmatmul.mubr.f32.gmra.mrb[0].mxu0 %v451
    %v816 = vpop.f32.mrb[0].mxu0
    %v817 = vadd.f32 0.0, %v816
    %v818 = vpop.f32.mrb[0].mxu0
    %819 = vmatprep.mubr.f32.mxu0 0.0
    %820 = vmatmul.mubr.f32.gmra.mrb[0].mxu0 %v454
    %v821 = vpop.f32.mrb[0].mxu0
    %v822 = vadd.f32 0.0, %v821
    %v823 = vpop.f32.mrb[0].mxu0
    %824 = vmatprep.mubr.f32.mxu0 0.0
    %825 = vmatmul.mubr.f32.gmra.mrb[0].mxu0 %v457
    %v826 = vpop.f32.mrb[0].mxu0
    %v827 = vadd.f32 0.0, %v826
    %v828 = vpop.f32.mrb[0].mxu0
    %829 = vmatprep.mubr.f32.mxu0 0.0
    %830 = vmatmul.mubr.f32.gmra.mrb[0].mxu0 %v460
    %v831 = vpop.f32.mrb[0].mxu0
    %v832 = vadd.f32 0.0, %v831
    %v833 = vpop.f32.mrb[0].mxu0
    %834 = vmatprep.mubr.f32.mxu0 0.0
    %835 = vmatmul.mubr.f32.gmra.mrb[0].mxu0 %v463
    %v836 = vpop.f32.mrb[0].mxu0
    %v837 = vadd.f32 0.0, %v836
    %v838 = vpop.f32.mrb[0].mxu0
    %839 = vmatprep.mubr.f32.mxu0 0.0
    %840 = vmatmul.mubr.f32.gmra.mrb[0].mxu0 %v466
    %v841 = vpop.f32.mrb[0].mxu0
    %v842 = vadd.f32 0.0, %v841
    %v843 = vpop.f32.mrb[0].mxu0
    %844 = vmatprep.mubr.f32.mxu0 0.0
    %845 = vmatmul.mubr.f32.gmra.mrb[0].mxu0 %v469
    %v846 = vpop.f32.mrb[0].mxu0
    %v847 = vadd.f32 0.0, %v846
    %v848 = vpop.f32.mrb[0].mxu0
    %849 = vmatprep.mubr.f32.mxu0 0.0
    %850 = vmatmul.mubr.f32.gmra.mrb[0].mxu0 %v472
    %v851 = vpop.f32.mrb[0].mxu0
    %v852 = vadd.f32 0.0, %v851
    %v853 = vpop.f32.mrb[0].mxu0
    %854 = vmatprep.mubr.f32.mxu0 0.0
    %855 = vmatmul.mubr.f32.gmra.mrb[0].mxu0 %v475
    %v856 = vpop.f32.mrb[0].mxu0
    %v857 = vadd.f32 0.0, %v856
    %v858 = vpop.f32.mrb[0].mxu0
    %859 = vmatprep.mubr.f32.mxu0 0.0
    %860 = vmatmul.mubr.f32.gmra.mrb[0].mxu0 %v478
    %v861 = vpop.f32.mrb[0].mxu0
    %v862 = vadd.f32 0.0, %v861
    %v863 = vpop.f32.mrb[0].mxu0
    %864 = vmatprep.mubr.f32.mxu0 0.0
    %865 = vmatmul.mubr.f32.gmra.mrb[0].mxu0 %v481
    %v866 = vpop.f32.mrb[0].mxu0
    %v867 = vadd.f32 0.0, %v866
    %v868 = vpop.f32.mrb[0].mxu0
    %869 = vmatprep.mubr.f32.mxu0 0.0
    %870 = vmatmul.mubr.f32.gmra.mrb[0].mxu0 %v484
    %v871 = vpop.f32.mrb[0].mxu0
    %v872 = vadd.f32 0.0, %v871
    %v873 = vpop.f32.mrb[0].mxu0
    %874 = vdwg.mxu0
    %875 = vst [vmem:[#allocation2] sm:$0xff] %v557
    %876 = vst [vmem:[#allocation2 + $0x8] sm:$0xff] %v562
    %877 = vst [vmem:[#allocation2 + $0x10] sm:$0xff] %v567
    %878 = vst [vmem:[#allocation2 + $0x18] sm:$0xff] %v572
    %879 = vst [vmem:[#allocation2 + $0x20] sm:$0xff] %v577
    %880 = vst [vmem:[#allocation2 + $0x28] sm:$0xff] %v582
    %881 = vst [vmem:[#allocation2 + $0x30] sm:$0xff] %v587
    %882 = vst [vmem:[#allocation2 + $0x38] sm:$0xff] %v592
    %883 = vst [vmem:[#allocation2 + $0x40] sm:$0xff] %v597
    %884 = vst [vmem:[#allocation2 + $0x48] sm:$0xff] %v602
    %885 = vst [vmem:[#allocation2 + $0x50] sm:$0xff] %v607
    %886 = vst [vmem:[#allocation2 + $0x58] sm:$0xff] %v612
    %887 = vst [vmem:[#allocation2 + $0x60] sm:$0xff] %v617
    %888 = vst [vmem:[#allocation2 + $0x68] sm:$0xff] %v622
    %889 = vst [vmem:[#allocation2 + $0x70] sm:$0xff] %v627
    %890 = vst [vmem:[#allocation2 + $0x78] sm:$0xff] %v632
    %891 = vst [vmem:[#allocation2 + $0x80] sm:$0xff] %v637
    %892 = vst [vmem:[#allocation2 + $0x88] sm:$0xff] %v642
    %893 = vst [vmem:[#allocation2 + $0x90] sm:$0xff] %v647
    %894 = vst [vmem:[#allocation2 + $0x98] sm:$0xff] %v652
    %895 = vst [vmem:[#allocation2 + $0xa0] sm:$0xff] %v657
    %896 = vst [vmem:[#allocation2 + $0xa8] sm:$0xff] %v662
    %897 = vst [vmem:[#allocation2 + $0xb0] sm:$0xff] %v667
    %898 = vst [vmem:[#allocation2 + $0xb8] sm:$0xff] %v672
    %899 = vst [vmem:[#allocation2 + $0xc0] sm:$0xff] %v677
    %900 = vst [vmem:[#allocation2 + $0xc8] sm:$0xff] %v682
    %901 = vst [vmem:[#allocation2 + $0xd0] sm:$0xff] %v687
    %902 = vst [vmem:[#allocation2 + $0xd8] sm:$0xff] %v692
    %903 = vst [vmem:[#allocation2 + $0xe0] sm:$0xff] %v697
    %904 = vst [vmem:[#allocation2 + $0xe8] sm:$0xff] %v702
    %905 = vst [vmem:[#allocation2 + $0xf0] sm:$0xff] %v707
    %906 = vst [vmem:[#allocation2 + $0xf8] sm:$0xff] %v712
    %907 = vst [vmem:[#allocation2 + $0x100] sm:$0xff] %v717
    %908 = vst [vmem:[#allocation2 + $0x108] sm:$0xff] %v722
    %909 = vst [vmem:[#allocation2 + $0x110] sm:$0xff] %v727
    %910 = vst [vmem:[#allocation2 + $0x118] sm:$0xff] %v732
    %911 = vst [vmem:[#allocation2 + $0x120] sm:$0xff] %v737
    %912 = vst [vmem:[#allocation2 + $0x128] sm:$0xff] %v742
    %913 = vst [vmem:[#allocation2 + $0x130] sm:$0xff] %v747
    %914 = vst [vmem:[#allocation2 + $0x138] sm:$0xff] %v752
    %915 = vst [vmem:[#allocation2 + $0x140] sm:$0xff] %v757
    %916 = vst [vmem:[#allocation2 + $0x148] sm:$0xff] %v762
    %917 = vst [vmem:[#allocation2 + $0x150] sm:$0xff] %v767
    %918 = vst [vmem:[#allocation2 + $0x158] sm:$0xff] %v772
    %919 = vst [vmem:[#allocation2 + $0x160] sm:$0xff] %v777
    %920 = vst [vmem:[#allocation2 + $0x168] sm:$0xff] %v782
    %921 = vst [vmem:[#allocation2 + $0x170] sm:$0xff] %v787
    %922 = vst [vmem:[#allocation2 + $0x178] sm:$0xff] %v792
    %923 = vst [vmem:[#allocation2 + $0x180] sm:$0xff] %v797
    %924 = vst [vmem:[#allocation2 + $0x188] sm:$0xff] %v802
    %925 = vst [vmem:[#allocation2 + $0x190] sm:$0xff] %v807
    %926 = vst [vmem:[#allocation2 + $0x198] sm:$0xff] %v812
    %927 = vst [vmem:[#allocation2 + $0x1a0] sm:$0xff] %v817
    %928 = vst [vmem:[#allocation2 + $0x1a8] sm:$0xff] %v822
    %929 = vst [vmem:[#allocation2 + $0x1b0] sm:$0xff] %v827
    %930 = vst [vmem:[#allocation2 + $0x1b8] sm:$0xff] %v832
    %931 = vst [vmem:[#allocation2 + $0x1c0] sm:$0xff] %v837
    %932 = vst [vmem:[#allocation2 + $0x1c8] sm:$0xff] %v842
    %933 = vst [vmem:[#allocation2 + $0x1d0] sm:$0xff] %v847
    %934 = vst [vmem:[#allocation2 + $0x1d8] sm:$0xff] %v852
    %935 = vst [vmem:[#allocation2 + $0x1e0] sm:$0xff] %v857
    %936 = vst [vmem:[#allocation2 + $0x1e8] sm:$0xff] %v862
    %937 = vst [vmem:[#allocation2 + $0x1f0] sm:$0xff] %v867
    %938 = vst [vmem:[#allocation2 + $0x1f8] sm:$0xff] %v872
    %v939 = vadd.f32 %v557, %v562
    %v940 = vadd.f32 %v939, %v567
    %v941 = vadd.f32 %v940, %v572
    %v942 = vadd.f32 %v941, %v577
    %v943 = vadd.f32 %v942, %v582
    %v944 = vadd.f32 %v943, %v587
    %v945 = vadd.f32 %v944, %v592
    %v946 = vadd.f32 %v945, %v597
    %v947 = vadd.f32 %v946, %v602
    %v948 = vadd.f32 %v947, %v607
    %v949 = vadd.f32 %v948, %v612
    %v950 = vadd.f32 %v949, %v617
    %v951 = vadd.f32 %v950, %v622
    %v952 = vadd.f32 %v951, %v627
    %v953 = vadd.f32 %v952, %v632
    %v954 = vadd.f32 %v953, %v637
    %v955 = vadd.f32 %v954, %v642
    %v956 = vadd.f32 %v955, %v647
    %v957 = vadd.f32 %v956, %v652
    %v958 = vadd.f32 %v957, %v657
    %v959 = vadd.f32 %v958, %v662
    %v960 = vadd.f32 %v959, %v667
    %v961 = vadd.f32 %v960, %v672
    %v962 = vadd.f32 %v961, %v677
    %v963 = vadd.f32 %v962, %v682
    %v964 = vadd.f32 %v963, %v687
    %v965 = vadd.f32 %v964, %v692
    %v966 = vadd.f32 %v965, %v697
    %v967 = vadd.f32 %v966, %v702
    %v968 = vadd.f32 %v967, %v707
    %v969 = vadd.f32 %v968, %v712
    %v970 = vadd.f32 %v969, %v717
    %v971 = vadd.f32 %v970, %v722
    %v972 = vadd.f32 %v971, %v727
    %v973 = vadd.f32 %v972, %v732
    %v974 = vadd.f32 %v973, %v737
    %v975 = vadd.f32 %v974, %v742
    %v976 = vadd.f32 %v975, %v747
    %v977 = vadd.f32 %v976, %v752
    %v978 = vadd.f32 %v977, %v757
    %v979 = vadd.f32 %v978, %v762
    %v980 = vadd.f32 %v979, %v767
    %v981 = vadd.f32 %v980, %v772
    %v982 = vadd.f32 %v981, %v777
    %v983 = vadd.f32 %v982, %v782
    %v984 = vadd.f32 %v983, %v787
    %v985 = vadd.f32 %v984, %v792
    %v986 = vadd.f32 %v985, %v797
    %v987 = vadd.f32 %v986, %v802
    %v988 = vadd.f32 %v987, %v807
    %v989 = vadd.f32 %v988, %v812
    %v990 = vadd.f32 %v989, %v817
    %v991 = vadd.f32 %v990, %v822
    %v992 = vadd.f32 %v991, %v827
    %v993 = vadd.f32 %v992, %v832
    %v994 = vadd.f32 %v993, %v837
    %v995 = vadd.f32 %v994, %v842
    %v996 = vadd.f32 %v995, %v847
    %v997 = vadd.f32 %v996, %v852
    %v998 = vadd.f32 %v997, %v857
    %v999 = vadd.f32 %v998, %v862
    %v1000 = vadd.f32 %v999, %v867
    %v1001 = vadd.f32 %v1000, %v872
    %1002 = vst [vmem:[#allocation4] sm:$0xff] %v1001
    %v1003 = vmul.f32 %v557, %v557
    %v1004 = vmul.f32 %v562, %v562
    %v1005 = vmul.f32 %v567, %v567
    %v1006 = vmul.f32 %v572, %v572
    %v1007 = vmul.f32 %v577, %v577
    %v1008 = vmul.f32 %v582, %v582
    %v1009 = vmul.f32 %v587, %v587
    %v1010 = vmul.f32 %v592, %v592
    %v1011 = vmul.f32 %v597, %v597
    %v1012 = vmul.f32 %v602, %v602
    %v1013 = vmul.f32 %v607, %v607
    %v1014 = vmul.f32 %v612, %v612
    %v1015 = vmul.f32 %v617, %v617
    %v1016 = vmul.f32 %v622, %v622
    %v1017 = vmul.f32 %v627, %v627
    %v1018 = vmul.f32 %v632, %v632
    %v1019 = vmul.f32 %v637, %v637
    %v1020 = vmul.f32 %v642, %v642
    %v1021 = vmul.f32 %v647, %v647
    %v1022 = vmul.f32 %v652, %v652
    %v1023 = vmul.f32 %v657, %v657
    %v1024 = vmul.f32 %v662, %v662
    %v1025 = vmul.f32 %v667, %v667
    %v1026 = vmul.f32 %v672, %v672
    %v1027 = vmul.f32 %v677, %v677
    %v1028 = vmul.f32 %v682, %v682
    %v1029 = vmul.f32 %v687, %v687
    %v1030 = vmul.f32 %v692, %v692
    %v1031 = vmul.f32 %v697, %v697
    %v1032 = vmul.f32 %v702, %v702
    %v1033 = vmul.f32 %v707, %v707
    %v1034 = vmul.f32 %v712, %v712
    %v1035 = vmul.f32 %v717, %v717
    %v1036 = vmul.f32 %v722, %v722
    %v1037 = vmul.f32 %v727, %v727
    %v1038 = vmul.f32 %v732, %v732
    %v1039 = vmul.f32 %v737, %v737
    %v1040 = vmul.f32 %v742, %v742
    %v1041 = vmul.f32 %v747, %v747
    %v1042 = vmul.f32 %v752, %v752
    %v1043 = vmul.f32 %v757, %v757
    %v1044 = vmul.f32 %v762, %v762
    %v1045 = vmul.f32 %v767, %v767
    %v1046 = vmul.f32 %v772, %v772
    %v1047 = vmul.f32 %v777, %v777
    %v1048 = vmul.f32 %v782, %v782
    %v1049 = vmul.f32 %v787, %v787
    %v1050 = vmul.f32 %v792, %v792
    %v1051 = vmul.f32 %v797, %v797
    %v1052 = vmul.f32 %v802, %v802
    %v1053 = vmul.f32 %v807, %v807
    %v1054 = vmul.f32 %v812, %v812
    %v1055 = vmul.f32 %v817, %v817
    %v1056 = vmul.f32 %v822, %v822
    %v1057 = vmul.f32 %v827, %v827
    %v1058 = vmul.f32 %v832, %v832
    %v1059 = vmul.f32 %v837, %v837
    %v1060 = vmul.f32 %v842, %v842
    %v1061 = vmul.f32 %v847, %v847
    %v1062 = vmul.f32 %v852, %v852
    %v1063 = vmul.f32 %v857, %v857
    %v1064 = vmul.f32 %v862, %v862
    %v1065 = vmul.f32 %v867, %v867
    %v1066 = vmul.f32 %v872, %v872
    %v1067 = vadd.f32 %v1003, %v1004
    %v1068 = vadd.f32 %v1067, %v1005
    %v1069 = vadd.f32 %v1068, %v1006
    %v1070 = vadd.f32 %v1069, %v1007
    %v1071 = vadd.f32 %v1070, %v1008
    %v1072 = vadd.f32 %v1071, %v1009
    %v1073 = vadd.f32 %v1072, %v1010
    %v1074 = vadd.f32 %v1073, %v1011
    %v1075 = vadd.f32 %v1074, %v1012
    %v1076 = vadd.f32 %v1075, %v1013
    %v1077 = vadd.f32 %v1076, %v1014
    %v1078 = vadd.f32 %v1077, %v1015
    %v1079 = vadd.f32 %v1078, %v1016
    %v1080 = vadd.f32 %v1079, %v1017
    %v1081 = vadd.f32 %v1080, %v1018
    %v1082 = vadd.f32 %v1081, %v1019
    %v1083 = vadd.f32 %v1082, %v1020
    %v1084 = vadd.f32 %v1083, %v1021
    %v1085 = vadd.f32 %v1084, %v1022
    %v1086 = vadd.f32 %v1085, %v1023
    %v1087 = vadd.f32 %v1086, %v1024
    %v1088 = vadd.f32 %v1087, %v1025
    %v1089 = vadd.f32 %v1088, %v1026
    %v1090 = vadd.f32 %v1089, %v1027
    %v1091 = vadd.f32 %v1090, %v1028
    %v1092 = vadd.f32 %v1091, %v1029
    %v1093 = vadd.f32 %v1092, %v1030
    %v1094 = vadd.f32 %v1093, %v1031
    %v1095 = vadd.f32 %v1094, %v1032
    %v1096 = vadd.f32 %v1095, %v1033
    %v1097 = vadd.f32 %v1096, %v1034
    %v1098 = vadd.f32 %v1097, %v1035
    %v1099 = vadd.f32 %v1098, %v1036
    %v1100 = vadd.f32 %v1099, %v1037
    %v1101 = vadd.f32 %v1100, %v1038
    %v1102 = vadd.f32 %v1101, %v1039
    %v1103 = vadd.f32 %v1102, %v1040
    %v1104 = vadd.f32 %v1103, %v1041
    %v1105 = vadd.f32 %v1104, %v1042
    %v1106 = vadd.f32 %v1105, %v1043
    %v1107 = vadd.f32 %v1106, %v1044
    %v1108 = vadd.f32 %v1107, %v1045
    %v1109 = vadd.f32 %v1108, %v1046
    %v1110 = vadd.f32 %v1109, %v1047
    %v1111 = vadd.f32 %v1110, %v1048
    %v1112 = vadd.f32 %v1111, %v1049
    %v1113 = vadd.f32 %v1112, %v1050
    %v1114 = vadd.f32 %v1113, %v1051
    %v1115 = vadd.f32 %v1114, %v1052
    %v1116 = vadd.f32 %v1115, %v1053
    %v1117 = vadd.f32 %v1116, %v1054
    %v1118 = vadd.f32 %v1117, %v1055
    %v1119 = vadd.f32 %v1118, %v1056
    %v1120 = vadd.f32 %v1119, %v1057
    %v1121 = vadd.f32 %v1120, %v1058
    %v1122 = vadd.f32 %v1121, %v1059
    %v1123 = vadd.f32 %v1122, %v1060
    %v1124 = vadd.f32 %v1123, %v1061
    %v1125 = vadd.f32 %v1124, %v1062
    %v1126 = vadd.f32 %v1125, %v1063
    %v1127 = vadd.f32 %v1126, %v1064
    %v1128 = vadd.f32 %v1127, %v1065
    %v1129 = vadd.f32 %v1128, %v1066
    %1130 = vst [vmem:[#allocation6] sm:$0xff] %v1129
    // Predicated region
    $region18: #{tpu_custom_call.1} parent=1 // pred_check
      _
    $region19: #{tpu_custom_call.1} parent=1 // pred_check_branch
      %1132 = sbr.rel (0) target = $region21
    $region20: #{tpu_custom_call.1} parent=1 // pred_region
      %s1134 = ssub.s32 8192, 8192
      %1135 = vsyncadd [#allocation3], %s1134
      %s1136 = sshll.u32 [#allocation2], 4
      %s1137 = int_to_ptr.vmem [resolvable:$true] %s1136
      %1142 = dma.vmem_to_hbm [thread:$0]  %s1137, 8192, %s4, [#allocation3], 128, 128, 8
    $region21: #{tpu_custom_call.1} parent=1 // pred_fallthru
      _
    // Predicated region
    $region22: #{tpu_custom_call.1} parent=1 // pred_check
      _
    $region23: #{tpu_custom_call.1} parent=1 // pred_check_branch
      %1144 = sbr.rel (0) target = $region25
    $region24: #{tpu_custom_call.1} parent=1 // pred_region
      %s1146 = ssub.s32 128, 128
      %1147 = vsyncadd [#allocation5], %s1146
      %s1149 = sshll.u32 [#allocation4], 4
      %s1150 = int_to_ptr.vmem [resolvable:$true] %s1149
      %1152 = dma.vmem_to_hbm [thread:$0]  %s1150, 128, %s5, [#allocation5]
    $region25: #{tpu_custom_call.1} parent=1 // pred_fallthru
      _
    // Predicated region
    $region26: #{tpu_custom_call.1} parent=1 // pred_check
      _
    $region27: #{tpu_custom_call.1} parent=1 // pred_check_branch
      %1154 = sbr.rel (0) target = $region29
    $region28: #{tpu_custom_call.1} parent=1 // pred_region
      %s1156 = ssub.s32 128, 128
      %1157 = vsyncadd [#allocation5], %s1156
      %s1159 = sshll.u32 [#allocation6], 4
      %s1160 = int_to_ptr.vmem [resolvable:$true] %s1159
      %1162 = dma.vmem_to_hbm [thread:$0]  %s1160, 128, %s6, [#allocation5]
    $region29: #{tpu_custom_call.1} parent=1 // pred_fallthru
      _
    // Predicated region
    $region30: #{tpu_custom_call.1} parent=1 // pred_check
      _
    $region31: #{tpu_custom_call.1} parent=1 // pred_check_branch
      %1164 = sbr.rel (0) target = $region33
    $region32: #{tpu_custom_call.1} parent=1 // pred_region
      %1165 = dma.done [#allocation3], 8192
    $region33: #{tpu_custom_call.1} parent=1 // pred_fallthru
      _
    // Predicated region
    $region34: #{tpu_custom_call.1} parent=1 // pred_check
      _
    $region35: #{tpu_custom_call.1} parent=1 // pred_check_branch
      %1167 = sbr.rel (0) target = $region37
    $region36: #{tpu_custom_call.1} parent=1 // pred_region
      %1168 = dma.done [#allocation5], 128
    $region37: #{tpu_custom_call.1} parent=1 // pred_fallthru
      _
    // Predicated region
    $region38: #{tpu_custom_call.1} parent=1 // pred_check
      _
    $region39: #{tpu_custom_call.1} parent=1 // pred_check_branch
      %1170 = sbr.rel (0) target = $region41
    $region40: #{tpu_custom_call.1} parent=1 // pred_region
      %1171 = dma.done [#allocation5], 128
    $region41: #{tpu_custom_call.1} parent=1 // pred_fallthru
      _
    %1172 = vsyncpa [#allocation3], 1
    %1173 = vsyncpa [#allocation5], 1

</llo_original>
